<compile_context>
chip_gen: v6e
topology: v6e:2x2x1
jax: 0.10.0
libtpu: 0.0.40
codegen_flags: <defaults>
</compile_context>

<pallas_src>
import functools

import jax
import jax.numpy as jnp
from jax import lax
from jax.experimental import pallas as pl
from jax.experimental.pallas import tpu as pltpu


def _round_up(x, m):
    return ((x + m - 1) // m) * m


def prepare_memory_bank(V, *, compute_dtype=jnp.bfloat16, lane=128):
    """Cast + lane-pad the memory bank ONCE (reuse across forward calls).

    Passing the result to ex_loss (with num_classes=true C) avoids the
    per-call f32->bf16 re-cast / re-pad of the full (C, F) bank.
    """
    C, _ = V.shape
    v = V.astype(compute_dtype)
    C_pad = _round_up(C, lane)
    if C_pad != C:
        v = jnp.pad(v, ((0, C_pad - C), (0, 0)))
    return v


def _exloss_kernel(x_ref, v_ref, tgt_ref, logits_ref, lrow_ref,
                   m_scr, l_scr, p_scr, *, valid_cols_last):
    """One (batch-tile, class-tile) grid step.

    x_ref:      (TB, F)   compute_dtype VMEM  (already scaled by t)
    v_ref:      (TC, F)   compute_dtype VMEM  (V rows for this class tile)
    tgt_ref:    (TB, 1)   int32         VMEM
    logits_ref: (TB, TC)  out_dtype     VMEM  (output tile of `outputs`)
    lrow_ref:   (TB, 1)   f32           VMEM  (per-row CE loss, last tile only)
    m_scr/l_scr/p_scr: (TB, 1) f32 VMEM scratch (online-softmax state)
    """
    c = pl.program_id(1)
    n_c = pl.num_programs(1)

    @pl.when(c == 0)
    def _():
        # NOTE: class-tile 0 always contains >=1 valid class, so the running
        # max turns finite on the first step and exp(m_prev - m_new) never
        # hits (-inf) - (-inf).
        m_scr[...] = jnp.full_like(m_scr, -jnp.inf)
        l_scr[...] = jnp.zeros_like(l_scr)
        p_scr[...] = jnp.zeros_like(p_scr)

    # Hot path: MXU matmul contracting over F (V kept (TC, F) -> no V.T copy).
    logits = lax.dot_general(
        x_ref[...], v_ref[...],
        dimension_numbers=(((1,), (1,)), ((), ())),
        preferred_element_type=jnp.float32)              # (TB, TC) f32
    logits_ref[...] = logits.astype(logits_ref.dtype)    # lane-dense store

    tb, tc = logits.shape
    col = lax.broadcasted_iota(jnp.int32, (tb, tc), 1)

    # Target-logit pick (one-hot hit, target index localized to this tile).
    tgt_local = tgt_ref[...] - c * tc                    # (TB, 1)
    p_scr[...] += jnp.sum(jnp.where(col == tgt_local, logits, 0.0),
                          axis=-1, keepdims=True)

    m_prev = m_scr[...]

    def _online_update(tile_max, tile_expsum):
        m_new = jnp.maximum(m_prev, tile_max)
        l_scr[...] = jnp.exp(m_prev - m_new) * l_scr[...] + tile_expsum(m_new)
        m_scr[...] = m_new

    if valid_cols_last == tc:
        # C is lane-aligned: no padded classes anywhere -> no masking at all.
        _online_update(
            jnp.max(logits, axis=-1, keepdims=True),
            lambda m_new: jnp.sum(jnp.exp(logits - m_new),
                                  axis=-1, keepdims=True))
    else:
        @pl.when(c != n_c - 1)
        def _():  # interior tiles: plain (unmasked) update
            _online_update(
                jnp.max(logits, axis=-1, keepdims=True),
                lambda m_new: jnp.sum(jnp.exp(logits - m_new),
                                      axis=-1, keepdims=True))

        @pl.when(c == n_c - 1)
        def _():  # last class tile: mask the padded class columns
            valid = col < valid_cols_last
            _online_update(
                jnp.max(jnp.where(valid, logits, -jnp.inf),
                        axis=-1, keepdims=True),
                lambda m_new: jnp.sum(
                    jnp.where(valid, jnp.exp(logits - m_new), 0.0),
                    axis=-1, keepdims=True))

    @pl.when(c == n_c - 1)
    def _():
        # per-row loss = logsumexp - picked_logit
        lrow_ref[...] = (m_scr[...] + jnp.log(l_scr[...]) -
                         p_scr[...]).astype(lrow_ref.dtype)


def ex_loss(inputs, V, targets, t=1.0, *, num_classes=None,
            compute_dtype=jnp.bfloat16, out_dtype=None,
            block_b=256, block_c=512):
    """JAX mirror of ExLoss.forward(inputs, targets) -> (loss, outputs).

    V may be the raw (C, F) bank (any float dtype) or a bank prepared with
    prepare_memory_bank (then pass num_classes=true C); the prepared path
    adds no per-call cast/pad HBM traffic.
    Returned `outputs` are in `out_dtype` (defaults to compute_dtype).
    """
    B, F = inputs.shape
    C_store, F2 = V.shape
    assert F == F2, "feature dims of inputs and V must match"
    C = int(num_classes) if num_classes is not None else int(C_store)
    assert 1 <= C <= max(C_store, C)
    out_dtype = compute_dtype if out_dtype is None else out_dtype

    # --- batch tiling: multiple-of-8 tile dividing the 8-padded batch;
    #     prefer >=2 tiles so both v7x TensorCores get work (megacore). ---
    B8 = _round_up(B, 8)
    tb_cap = max(8, min(_round_up(block_b, 8), B8))
    b_cands = [d for d in range(8, tb_cap + 1, 8) if B8 % d == 0]
    TB = max(b_cands)
    if B8 // TB < 2:
        smaller = [d for d in b_cands if B8 // d >= 2]
        if smaller:
            TB = max(smaller)
    B_pad = B8

    # --- class tiling: multiple-of-128 (lane-dense) tile dividing the
    #     128-padded class extent (minimum padding, no hidden re-pad). ---
    C_pad = _round_up(max(C, C_store), 128)
    tc_cap = max(128, min(_round_up(block_c, 128), C_pad))
    c_cands = [d for d in range(128, tc_cap + 1, 128) if C_pad % d == 0]
    TC = max(c_cands)
    n_c = C_pad // TC
    valid_cols_last = TC - (C_pad - C)   # valid class columns in last tile

    # --- operand prep (cast/pad only when actually needed) ---
    x = inputs.astype(jnp.float32)
    if t != 1.0:
        # Fold the temperature into x once (f32, before the bf16 cast) instead
        # of scaling every (TB, TC) logits tile inside the kernel.
        x = x * jnp.float32(t)
    x = x.astype(compute_dtype)
    if B_pad != B:
        x = jnp.pad(x, ((0, B_pad - B), (0, 0)))

    v = V if V.dtype == jnp.dtype(compute_dtype) else V.astype(compute_dtype)
    if C_pad != C_store:
        v = jnp.pad(v, ((0, C_pad - C_store), (0, 0)))

    tgt = targets.astype(jnp.int32)
    if B_pad != B:
        tgt = jnp.pad(tgt, (0, B_pad - B))
    tgt = tgt.reshape(B_pad, 1)

    grid = (B_pad // TB, n_c)
    kernel = functools.partial(_exloss_kernel, valid_cols_last=valid_cols_last)

    isz_c = jnp.dtype(compute_dtype).itemsize
    isz_o = jnp.dtype(out_dtype).itemsize
    cost = pl.CostEstimate(
        flops=2 * B_pad * C_pad * F,
        transcendentals=B_pad * C_pad,
        bytes_accessed=(B_pad * F * isz_c                        # x streamed once
                        + grid[0] * C_pad * F * isz_c            # V re-streamed per batch tile
                        + B_pad * C_pad * isz_o                  # logits writeback
                        + B_pad * 4 * 2),                        # targets + loss rows
    )

    # Per-step VMEM footprint (double-buffered x / V / logits tiles + scratch).
    step_bytes = (2 * TB * F * isz_c + 2 * TC * F * isz_c
                  + 2 * TB * TC * isz_o + 4 * TB * 4 + 3 * TB * 4)
    vmem_limit = int(min(max(2 * step_bytes + (8 << 20), 32 << 20), 56 << 20))

    logits_pad, loss_rows = pl.pallas_call(
        kernel,
        grid_spec=pltpu.PrefetchScalarGridSpec(
            num_scalar_prefetch=0,
            grid=grid,
            in_specs=[
                pl.BlockSpec((TB, F), lambda b, c: (b, 0)),    # x: batch tile
                pl.BlockSpec((TC, F), lambda b, c: (c, 0)),    # V: class tile
                pl.BlockSpec((TB, 1), lambda b, c: (b, 0)),    # targets
            ],
            out_specs=(
                pl.BlockSpec((TB, TC), lambda b, c: (b, c)),   # logits tile
                pl.BlockSpec((TB, 1), lambda b, c: (b, 0)),    # per-row loss
            ),
            scratch_shapes=[
                pltpu.VMEM((TB, 1), jnp.float32),   # running max
                pltpu.VMEM((TB, 1), jnp.float32),   # running sum(exp)
                pltpu.VMEM((TB, 1), jnp.float32),   # running picked logit
            ],
        ),
        out_shape=(
            jax.ShapeDtypeStruct((B_pad, C_pad), out_dtype),
            jax.ShapeDtypeStruct((B_pad, 1), jnp.float32),
        ),
        compiler_params=pltpu.CompilerParams(
            dimension_semantics=("parallel", "arbitrary"),
            vmem_limit_bytes=vmem_limit),
        cost_estimate=cost,
    )(x, v, tgt)

    logits = logits_pad
    if B_pad != B or C_pad != C:
        logits = logits_pad[:B, :C]
    loss = jnp.mean(loss_rows[:B, 0])   # mean over the TRUE batch size
    return loss, logits


def _ref_ex_loss(inputs, V, targets, t, compute_dtype):
    """Pure-JAX reference with the same bf16-operand / f32-accumulate contract
    (temperature folded into x before the cast, matching the kernel wrapper)."""
    x = (inputs.astype(jnp.float32) * jnp.float32(t)).astype(compute_dtype)
    logits = jnp.dot(x, V.astype(compute_dtype).T,
                     preferred_element_type=jnp.float32)
    lse = jax.scipy.special.logsumexp(logits, axis=-1)
    picked = jnp.take_along_axis(logits, targets[:, None], axis=-1)[:, 0]
    return jnp.mean(lse - picked), logits


if __name__ == "__main__":
    key = jax.random.PRNGKey(0)

    # ---- Test 1: padded classes + multiple batch/class tiles + prepped bank.
    # batch=24, num_features=64, num_classes=300 (-> C_pad=384, 3 class tiles
    # of 128), TB=8 -> 3 parallel batch tiles, t=10.0.
    B, F, C = 24, 64, 300
    t = 10.0
    k_x, k_v, k_t = jax.random.split(key, 3)
    inputs = jax.random.normal(k_x, (B, F), dtype=jnp.float32)
    V = jax.random.normal(k_v, (C, F), dtype=jnp.float32)
    V = V / jnp.linalg.norm(V, axis=1, keepdims=True)   # L2-normalized rows
    targets = jax.random.randint(k_t, (B,), 0, C, dtype=jnp.int32)

    V_bank = prepare_memory_bank(V)                     # cast+pad ONCE
    loss, outputs = ex_loss(inputs, V_bank, targets, t=t, num_classes=C,
                            block_b=8, block_c=128)
    jax.block_until_ready((loss, outputs))

    ref_loss, ref_outputs = _ref_ex_loss(inputs, V, targets, t, jnp.bfloat16)
    assert outputs.shape == (B, C)
    assert jnp.allclose(outputs.astype(jnp.float32), ref_outputs,
                        atol=0.2, rtol=1e-2)            # bf16 output rounding
    assert jnp.allclose(loss, ref_loss, atol=1e-3, rtol=1e-3)

    # ---- Test 2: lane-aligned classes (mask compiled out), raw f32 bank,
    # default tile heuristics split the batch into 2 parallel tiles.
    B2, F2, C2, t2 = 16, 32, 256, 2.0
    k_x2, k_v2, k_t2 = jax.random.split(jax.random.PRNGKey(1), 3)
    inputs2 = jax.random.normal(k_x2, (B2, F2), dtype=jnp.float32)
    V2 = jax.random.normal(k_v2, (C2, F2), dtype=jnp.float32)
    V2 = V2 / jnp.linalg.norm(V2, axis=1, keepdims=True)
    targets2 = jax.random.randint(k_t2, (B2,), 0, C2, dtype=jnp.int32)

    loss2, outputs2 = ex_loss(inputs2, V2, targets2, t=t2)
    jax.block_until_ready((loss2, outputs2))
    ref_loss2, ref_outputs2 = _ref_ex_loss(inputs2, V2, targets2, t2,
                                           jnp.bfloat16)
    assert outputs2.shape == (B2, C2)
    assert jnp.allclose(outputs2.astype(jnp.float32), ref_outputs2,
                        atol=0.1, rtol=1e-2)
    assert jnp.allclose(loss2, ref_loss2, atol=1e-3, rtol=1e-3)

    print("KERNEL_OK")
</pallas_src>

<mosaic_0001>
module attributes {stable_mosaic.version = 11 : i64} {
  func.func @_exloss_kernel(%arg0: i32, %arg1: i32, %arg2: memref<8x64xbf16, #tpu.memory_space<vmem>>, %arg3: memref<128x64xbf16, #tpu.memory_space<vmem>>, %arg4: memref<8x1xi32, #tpu.memory_space<vmem>>, %arg5: memref<8x128xbf16, #tpu.memory_space<vmem>>, %arg6: memref<8x1xf32, #tpu.memory_space<vmem>>, %arg7: memref<8x1xf32, #tpu.memory_space<vmem>>, %arg8: memref<8x1xf32, #tpu.memory_space<vmem>>, %arg9: memref<8x1xf32, #tpu.memory_space<vmem>>) attributes {dimension_semantics = [#tpu.dimension_semantics<parallel>, #tpu.dimension_semantics<arbitrary>], iteration_bounds = array<i64: 3, 3>, scalar_prefetch = 0 : i64, scratch_operands = 3 : i64, tpu.core_type = #tpu.core_type<tc>, window_params = [{transform_indices = @transform_0, window_bounds = array<i64: 8, 64>}, {transform_indices = @transform_1, window_bounds = array<i64: 128, 64>}, {transform_indices = @transform_2, window_bounds = array<i64: 8, 1>}, {transform_indices = @transform_3, window_bounds = array<i64: 8, 128>}, {transform_indices = @transform_4, window_bounds = array<i64: 8, 1>}]} {
    %c0_i32 = arith.constant 0 : i32
    %0 = arith.cmpi eq, %arg1, %c0_i32 : i32
    %1 = arith.extui %0 : i1 to i32
    %c0_i32_0 = arith.constant 0 : i32
    %2 = arith.cmpi ne, %1, %c0_i32_0 : i32
    scf.if %2 {
      %cst_21 = arith.constant 0xFF800000 : f32
      %32 = vector.broadcast %cst_21 : f32 to vector<8x1xf32>
      %c0_22 = arith.constant 0 : index
      %c0_23 = arith.constant 0 : index
      %33 = vector.load %arg7[%c0_22, %c0_23] : memref<8x1xf32, #tpu.memory_space<vmem>>, vector<8x1xf32>
      tpu.vector_store %arg7[%c0_22, %c0_23], %32 {strides = array<i32>} : memref<8x1xf32, #tpu.memory_space<vmem>>, vector<8x1xf32>,
      %cst_24 = arith.constant 0.000000e+00 : f32
      %34 = vector.broadcast %cst_24 : f32 to vector<8x1xf32>
      %c0_25 = arith.constant 0 : index
      %c0_26 = arith.constant 0 : index
      %35 = vector.load %arg8[%c0_25, %c0_26] : memref<8x1xf32, #tpu.memory_space<vmem>>, vector<8x1xf32>
      tpu.vector_store %arg8[%c0_25, %c0_26], %34 {strides = array<i32>} : memref<8x1xf32, #tpu.memory_space<vmem>>, vector<8x1xf32>,
      %cst_27 = arith.constant 0.000000e+00 : f32
      %36 = vector.broadcast %cst_27 : f32 to vector<8x1xf32>
      %c0_28 = arith.constant 0 : index
      %c0_29 = arith.constant 0 : index
      %37 = vector.load %arg9[%c0_28, %c0_29] : memref<8x1xf32, #tpu.memory_space<vmem>>, vector<8x1xf32>
      tpu.vector_store %arg9[%c0_28, %c0_29], %36 {strides = array<i32>} : memref<8x1xf32, #tpu.memory_space<vmem>>, vector<8x1xf32>,
    } else {
    }
    %c0 = arith.constant 0 : index
    %c0_1 = arith.constant 0 : index
    %3 = vector.load %arg2[%c0, %c0_1] : memref<8x64xbf16, #tpu.memory_space<vmem>>, vector<8x64xbf16>
    %c0_2 = arith.constant 0 : index
    %c0_3 = arith.constant 0 : index
    %4 = vector.load %arg3[%c0_2, %c0_3] : memref<128x64xbf16, #tpu.memory_space<vmem>>, vector<128x64xbf16>
    %cst = arith.constant dense<0.000000e+00> : vector<8x128xf32>
    %5 = tpu.matmul %3, %4, %cst {dimension_numbers = #tpu.dot_dimension_numbers<[1], [1], [0], [0], [0, 0, 1, 0], [], []>} : vector<8x64xbf16>, vector<128x64xbf16>, vector<8x128xf32> -> vector<8x128xf32>
    %6 = arith.truncf %5 : vector<8x128xf32> to vector<8x128xbf16>
    %c0_4 = arith.constant 0 : index
    %c0_5 = arith.constant 0 : index
    %7 = vector.load %arg5[%c0_4, %c0_5] : memref<8x128xbf16, #tpu.memory_space<vmem>>, vector<8x128xbf16>
    tpu.vector_store %arg5[%c0_4, %c0_5], %6 {strides = array<i32>} : memref<8x128xbf16, #tpu.memory_space<vmem>>, vector<8x128xbf16>,
    %8 = tpu.iota {dimensions = array<i32: 1>} : vector<8x128xi32>
    %c0_6 = arith.constant 0 : index
    %c0_7 = arith.constant 0 : index
    %9 = vector.load %arg4[%c0_6, %c0_7] : memref<8x1xi32, #tpu.memory_space<vmem>>, vector<8x1xi32>
    %c128_i32 = arith.constant 128 : i32
    %10 = arith.muli %arg1, %c128_i32 : i32
    %11 = vector.broadcast %10 : i32 to vector<8x1xi32>
    %12 = arith.subi %9, %11 : vector<8x1xi32>
    %c0_8 = arith.constant 0 : index
    %c0_9 = arith.constant 0 : index
    %13 = vector.load %arg9[%c0_8, %c0_9] : memref<8x1xf32, #tpu.memory_space<vmem>>, vector<8x1xf32>
    %14 = vector.broadcast %12 : vector<8x1xi32> to vector<8x128xi32>
    %15 = arith.cmpi eq, %8, %14 : vector<8x128xi32>
    %cst_10 = arith.constant 0.000000e+00 : f32
    %16 = vector.broadcast %cst_10 : f32 to vector<8x128xf32>
    %17 = arith.select %15, %5, %16 : vector<8x128xi1>, vector<8x128xf32>
    %cst_11 = arith.constant dense<0.000000e+00> : vector<8xf32>
    %18 = vector.multi_reduction <add>, %17, %cst_11 [1] : vector<8x128xf32> to vector<8xf32>
    %19 = vector.shape_cast %18 : vector<8xf32> to vector<8x1xf32>
    %20 = arith.addf %13, %19 : vector<8x1xf32>
    %c0_12 = arith.constant 0 : index
    %c0_13 = arith.constant 0 : index
    %21 = vector.load %arg9[%c0_12, %c0_13] : memref<8x1xf32, #tpu.memory_space<vmem>>, vector<8x1xf32>
    tpu.vector_store %arg9[%c0_12, %c0_13], %20 {strides = array<i32>} : memref<8x1xf32, #tpu.memory_space<vmem>>, vector<8x1xf32>,
    %c0_14 = arith.constant 0 : index
    %c0_15 = arith.constant 0 : index
    %22 = vector.load %arg7[%c0_14, %c0_15] : memref<8x1xf32, #tpu.memory_space<vmem>>, vector<8x1xf32>
    %c2_i32 = arith.constant 2 : i32
    %23 = arith.cmpi ne, %arg1, %c2_i32 : i32
    %24 = arith.extui %23 : i1 to i32
    %c0_i32_16 = arith.constant 0 : i32
    %25 = arith.cmpi ne, %24, %c0_i32_16 : i32
    scf.if %25 {
      %cst_21 = arith.constant dense<0xFF800000> : vector<8xf32>
      %32 = vector.multi_reduction <maximumf>, %5, %cst_21 [1] : vector<8x128xf32> to vector<8xf32>
      %33 = vector.shape_cast %32 : vector<8xf32> to vector<8x1xf32>
      %34 = arith.maximumf %22, %33 : vector<8x1xf32>
      %35 = arith.subf %22, %34 : vector<8x1xf32>
      %36 = math.exp %35 : vector<8x1xf32>
      %c0_22 = arith.constant 0 : index
      %c0_23 = arith.constant 0 : index
      %37 = vector.load %arg8[%c0_22, %c0_23] : memref<8x1xf32, #tpu.memory_space<vmem>>, vector<8x1xf32>
      %38 = arith.mulf %36, %37 : vector<8x1xf32>
      %39 = vector.broadcast %34 : vector<8x1xf32> to vector<8x128xf32>
      %40 = arith.subf %5, %39 : vector<8x128xf32>
      %41 = math.exp %40 : vector<8x128xf32>
      %cst_24 = arith.constant dense<0.000000e+00> : vector<8xf32>
      %42 = vector.multi_reduction <add>, %41, %cst_24 [1] : vector<8x128xf32> to vector<8xf32>
      %43 = vector.shape_cast %42 : vector<8xf32> to vector<8x1xf32>
      %44 = arith.addf %38, %43 : vector<8x1xf32>
      %c0_25 = arith.constant 0 : index
      %c0_26 = arith.constant 0 : index
      %45 = vector.load %arg8[%c0_25, %c0_26] : memref<8x1xf32, #tpu.memory_space<vmem>>, vector<8x1xf32>
      tpu.vector_store %arg8[%c0_25, %c0_26], %44 {strides = array<i32>} : memref<8x1xf32, #tpu.memory_space<vmem>>, vector<8x1xf32>,
      %c0_27 = arith.constant 0 : index
      %c0_28 = arith.constant 0 : index
      %46 = vector.load %arg7[%c0_27, %c0_28] : memref<8x1xf32, #tpu.memory_space<vmem>>, vector<8x1xf32>
      tpu.vector_store %arg7[%c0_27, %c0_28], %34 {strides = array<i32>} : memref<8x1xf32, #tpu.memory_space<vmem>>, vector<8x1xf32>,
    } else {
    }
    %c2_i32_17 = arith.constant 2 : i32
    %26 = arith.cmpi eq, %arg1, %c2_i32_17 : i32
    %27 = arith.extui %26 : i1 to i32
    %c0_i32_18 = arith.constant 0 : i32
    %28 = arith.cmpi ne, %27, %c0_i32_18 : i32
    scf.if %28 {
      %c44_i32 = arith.constant 44 : i32
      %32 = vector.broadcast %c44_i32 : i32 to vector<8x128xi32>
      %33 = arith.cmpi slt, %8, %32 : vector<8x128xi32>
      %cst_21 = arith.constant 0xFF800000 : f32
      %34 = vector.broadcast %cst_21 : f32 to vector<8x128xf32>
      %35 = arith.select %33, %5, %34 : vector<8x128xi1>, vector<8x128xf32>
      %cst_22 = arith.constant dense<0xFF800000> : vector<8xf32>
      %36 = vector.multi_reduction <maximumf>, %35, %cst_22 [1] : vector<8x128xf32> to vector<8xf32>
      %37 = vector.shape_cast %36 : vector<8xf32> to vector<8x1xf32>
      %38 = arith.maximumf %22, %37 : vector<8x1xf32>
      %39 = arith.subf %22, %38 : vector<8x1xf32>
      %40 = math.exp %39 : vector<8x1xf32>
      %c0_23 = arith.constant 0 : index
      %c0_24 = arith.constant 0 : index
      %41 = vector.load %arg8[%c0_23, %c0_24] : memref<8x1xf32, #tpu.memory_space<vmem>>, vector<8x1xf32>
      %42 = arith.mulf %40, %41 : vector<8x1xf32>
      %43 = vector.broadcast %38 : vector<8x1xf32> to vector<8x128xf32>
      %44 = arith.subf %5, %43 : vector<8x128xf32>
      %45 = math.exp %44 : vector<8x128xf32>
      %cst_25 = arith.constant 0.000000e+00 : f32
      %46 = vector.broadcast %cst_25 : f32 to vector<8x128xf32>
      %47 = arith.select %33, %45, %46 : vector<8x128xi1>, vector<8x128xf32>
      %cst_26 = arith.constant dense<0.000000e+00> : vector<8xf32>
      %48 = vector.multi_reduction <add>, %47, %cst_26 [1] : vector<8x128xf32> to vector<8xf32>
      %49 = vector.shape_cast %48 : vector<8xf32> to vector<8x1xf32>
      %50 = arith.addf %42, %49 : vector<8x1xf32>
      %c0_27 = arith.constant 0 : index
      %c0_28 = arith.constant 0 : index
      %51 = vector.load %arg8[%c0_27, %c0_28] : memref<8x1xf32, #tpu.memory_space<vmem>>, vector<8x1xf32>
      tpu.vector_store %arg8[%c0_27, %c0_28], %50 {strides = array<i32>} : memref<8x1xf32, #tpu.memory_space<vmem>>, vector<8x1xf32>,
      %c0_29 = arith.constant 0 : index
      %c0_30 = arith.constant 0 : index
      %52 = vector.load %arg7[%c0_29, %c0_30] : memref<8x1xf32, #tpu.memory_space<vmem>>, vector<8x1xf32>
      tpu.vector_store %arg7[%c0_29, %c0_30], %38 {strides = array<i32>} : memref<8x1xf32, #tpu.memory_space<vmem>>, vector<8x1xf32>,
    } else {
    }
    %c2_i32_19 = arith.constant 2 : i32
    %29 = arith.cmpi eq, %arg1, %c2_i32_19 : i32
    %30 = arith.extui %29 : i1 to i32
    %c0_i32_20 = arith.constant 0 : i32
    %31 = arith.cmpi ne, %30, %c0_i32_20 : i32
    scf.if %31 {
      %c0_21 = arith.constant 0 : index
      %c0_22 = arith.constant 0 : index
      %32 = vector.load %arg7[%c0_21, %c0_22] : memref<8x1xf32, #tpu.memory_space<vmem>>, vector<8x1xf32>
      %c0_23 = arith.constant 0 : index
      %c0_24 = arith.constant 0 : index
      %33 = vector.load %arg8[%c0_23, %c0_24] : memref<8x1xf32, #tpu.memory_space<vmem>>, vector<8x1xf32>
      %34 = math.log %33 : vector<8x1xf32>
      %35 = arith.addf %32, %34 : vector<8x1xf32>
      %c0_25 = arith.constant 0 : index
      %c0_26 = arith.constant 0 : index
      %36 = vector.load %arg9[%c0_25, %c0_26] : memref<8x1xf32, #tpu.memory_space<vmem>>, vector<8x1xf32>
      %37 = arith.subf %35, %36 : vector<8x1xf32>
      %c0_27 = arith.constant 0 : index
      %c0_28 = arith.constant 0 : index
      %38 = vector.load %arg6[%c0_27, %c0_28] : memref<8x1xf32, #tpu.memory_space<vmem>>, vector<8x1xf32>
      tpu.vector_store %arg6[%c0_27, %c0_28], %37 {strides = array<i32>} : memref<8x1xf32, #tpu.memory_space<vmem>>, vector<8x1xf32>,
    } else {
    }
    return
  }
  func.func @transform_0(%arg0: i32, %arg1: i32) -> (i32, i32) {
    %c0_i32 = arith.constant 0 : i32
    %c0_i32_0 = arith.constant 0 : i32
    return %arg0, %c0_i32 : i32, i32
  }
  func.func @transform_1(%arg0: i32, %arg1: i32) -> (i32, i32) {
    %c0_i32 = arith.constant 0 : i32
    %c0_i32_0 = arith.constant 0 : i32
    return %arg1, %c0_i32 : i32, i32
  }
  func.func @transform_2(%arg0: i32, %arg1: i32) -> (i32, i32) {
    %c0_i32 = arith.constant 0 : i32
    %c0_i32_0 = arith.constant 0 : i32
    return %arg0, %c0_i32 : i32, i32
  }
  func.func @transform_3(%arg0: i32, %arg1: i32) -> (i32, i32) {
    %c0_i32 = arith.constant 0 : i32
    return %arg0, %arg1 : i32, i32
  }
  func.func @transform_4(%arg0: i32, %arg1: i32) -> (i32, i32) {
    %c0_i32 = arith.constant 0 : i32
    %c0_i32_0 = arith.constant 0 : i32
    return %arg0, %c0_i32 : i32, i32
  }
}

</mosaic_0001>

<llo_original>
// kernel: tpu_custom_call.1
$region0: #{tpu_custom_call.1}
  #allocation0 [shape = 'u32[]', space=smem, size = 0x4, offset = 0x4, fixed_abs, tag = 'smem constant byte address 0x4 - core index']
  #allocation1 [shape = 'u32[144,128]{1,0:T(1,128)}', space=vmem, size = 0x12000, scoped, tag = 'internal scratch']
  #allocation2 [shape = 'f32[8,1]{1,0:T(8,128)}', space=vmem, size = 0x1000, scoped, tag = 'scratch operand']
  #allocation3 [shape = 'f32[8,1]{1,0:T(8,128)}', space=vmem, size = 0x1000, scoped, tag = 'scratch operand']
  #allocation4 [shape = 'f32[8,1]{1,0:T(8,128)}', space=vmem, size = 0x1000, scoped, tag = 'scratch operand']
  %s0 = inlined_call_operand.vmem [shape: bf16[24,64], index: 0, kind: input, shape index: {}]
  %s1 = inlined_call_operand.vmem [shape: bf16[384,64], index: 1, kind: input, shape index: {}]
  %s2 = inlined_call_operand.vmem [shape: s32[24,1], index: 2, kind: input, shape index: {}]
  %s3 = inlined_call_operand.hbm [shape: bf16[24,384], index: 3, kind: output, shape index: {0}]
  %s4 = inlined_call_operand.vmem [shape: f32[24,1], index: 4, kind: output, shape index: {1}]
  %5 = xla_tuple %s3, %s4
  %s6 = sld [smem:[#allocation0]]
  $region65: #{tpu_custom_call.1} parent=0
    _
  %s8 = ssub.s32 1, %s6
  %s9 = scalar_select 0, %s8, %s6
  $region1: #{tpu_custom_call.1} parent=0
    #allocation5 [shape = 'u8[4096]{0}', space=vmem, size = 0x1000, scoped, tag = 'output window, operand 0']
    #allocation6 [shape = 's32[2]{0}', space=sflag, size = 0x8, scoped, tag = 'scoped memory for tpu_custom_call.1']
    %10 = vsyncpa [#allocation6], 0
    %s11 = scalar_lea.sflag [#allocation6], 1
    %12 = vsyncpa %s11, 0
    loop: start=0, step=1, limit=11
    $region2: #{tpu_custom_call.1} parent=1 // loop_pre_header
      _
    $region3: #{tpu_custom_call.1} parent=1 // loop_header
      %s14 = sphi 0, %s18
      %p15 = scmp.ge.s32.totalorder %s14, 11
      %s21 = sphi 0, %s33
      %s22 = sphi 0, %s29
      %s23 = sphi 0, %s21
      %s24 = sphi 0, %s22
      %s25 = sphi 0, %s23
      %s26 = sphi 0, %s24
      %s36 = sphi 0, %s38
      %s39 = sphi 0, %s36
      %s40 = sphi 0, %s39
      %s56 = sphi 0, %s40
      %s62 = sphi 0, %s64
      %s65 = sphi 0, %s62
      %s66 = sphi 0, %s65
      %s82 = sphi 0, %s66
      %s88 = sphi 0, %s90
      %s91 = sphi 0, %s88
      %s92 = sphi 0, %s91
      %s108 = sphi 0, %s92
      %s116 = sphi 0, %s118
      %s119 = sphi 0, %s116
      %s120 = sphi 0, %s119
      %s136 = sphi 0, %s120
      %s142 = sphi 0, %s144
      %s145 = sphi 0, %s142
      %s146 = sphi 0, %s145
      %s162 = sphi 0, %s146
    $region4: #{tpu_custom_call.1} parent=1 // loop_header_branch
      %17 = sbr.rel (%p15) target = $region8
    $region5: #{tpu_custom_call.1} parent=1 // loop_body
      %s19 = ssub.s32 %s14, 1
      %s20 = ssub.s32 %s14, 2
      %s27 = sadd.s32 1, %s22
      %p28 = scmp.ge.s32.totalorder %s27, 3
      %s29 = scalar_select %p28, 0, %s27
      %s30 = sadd.s32 1, %s21
      %s31 = scalar_select %p28, %s30, %s21
      %p32 = scmp.ge.s32.totalorder %s31, 3
      %s33 = scalar_select %p32, 0, %s31
      %s34 = ssub.s32 %s21, %s33
      %p35 = scmp.eq.s32.totalorder %s34, 0
      %s37 = sadd.s32 %s36, 1
      %s38 = scalar_select %p35, %s36, %s37
      %p41 = pneg %p35
      %p42 = scmp.eq.s32.totalorder %s14, 8
      %p43 = por %p41, %p42
      %p44 = scmp.ne.s32.totalorder %s36, %s39
      %p45 = scmp.eq.s32.totalorder %s14, 0
      %p46 = por %p44, %p45
      %p47 = scmp.ne.s32.totalorder %s36, %s39
      %p48 = scmp.eq.s32.totalorder %s19, 8
      %p49 = por %p47, %p48
      %p50 = scmp.ne.s32.totalorder %s39, %s40
      %p51 = scmp.eq.s32.totalorder %s19, 0
      %p52 = por %p50, %p51
      %p53 = scmp.ne.s32.totalorder %s39, %s40
      %p54 = scmp.eq.s32.totalorder %s20, 8
      %p55 = por %p53, %p54
      %p57 = scmp.ne.s32.totalorder %s40, %s56
      %p58 = scmp.eq.s32.totalorder %s20, 0
      %p59 = por %p57, %p58
      %s60 = ssub.s32 %s22, %s29
      %p61 = scmp.eq.s32.totalorder %s60, 0
      %s63 = sadd.s32 %s62, 1
      %s64 = scalar_select %p61, %s62, %s63
      %p67 = pneg %p61
      %p68 = scmp.eq.s32.totalorder %s14, 8
      %p69 = por %p67, %p68
      %p70 = scmp.ne.s32.totalorder %s62, %s65
      %p71 = scmp.eq.s32.totalorder %s14, 0
      %p72 = por %p70, %p71
      %p73 = scmp.ne.s32.totalorder %s62, %s65
      %p74 = scmp.eq.s32.totalorder %s19, 8
      %p75 = por %p73, %p74
      %p76 = scmp.ne.s32.totalorder %s65, %s66
      %p77 = scmp.eq.s32.totalorder %s19, 0
      %p78 = por %p76, %p77
      %p79 = scmp.ne.s32.totalorder %s65, %s66
      %p80 = scmp.eq.s32.totalorder %s20, 8
      %p81 = por %p79, %p80
      %p83 = scmp.ne.s32.totalorder %s66, %s82
      %p84 = scmp.eq.s32.totalorder %s20, 0
      %p85 = por %p83, %p84
      %s86 = ssub.s32 %s21, %s33
      %p87 = scmp.eq.s32.totalorder %s86, 0
      %s89 = sadd.s32 %s88, 1
      %s90 = scalar_select %p87, %s88, %s89
      %p93 = pneg %p87
      %p94 = scmp.eq.s32.totalorder %s14, 8
      %p95 = por %p93, %p94
      %p96 = scmp.ne.s32.totalorder %s88, %s91
      %p97 = scmp.eq.s32.totalorder %s14, 0
      %p98 = por %p96, %p97
      %p99 = scmp.ne.s32.totalorder %s88, %s91
      %p100 = scmp.eq.s32.totalorder %s19, 8
      %p101 = por %p99, %p100
      %p102 = scmp.ne.s32.totalorder %s91, %s92
      %p103 = scmp.eq.s32.totalorder %s19, 0
      %p104 = por %p102, %p103
      %p105 = scmp.ne.s32.totalorder %s91, %s92
      %p106 = scmp.eq.s32.totalorder %s20, 8
      %p107 = por %p105, %p106
      %p109 = scmp.ne.s32.totalorder %s92, %s108
      %p110 = scmp.eq.s32.totalorder %s20, 0
      %p111 = por %p109, %p110
      %s112 = ssub.s32 %s21, %s33
      %s113 = ssub.s32 %s22, %s29
      %s114 = sor.u32 %s112, %s113
      %p115 = scmp.eq.s32.totalorder %s114, 0
      %s117 = sadd.s32 %s116, 1
      %s118 = scalar_select %p115, %s116, %s117
      %p121 = pneg %p115
      %p122 = scmp.eq.s32.totalorder %s14, 8
      %p123 = por %p121, %p122
      %p124 = scmp.ne.s32.totalorder %s116, %s119
      %p125 = scmp.eq.s32.totalorder %s14, 0
      %p126 = por %p124, %p125
      %p127 = scmp.ne.s32.totalorder %s116, %s119
      %p128 = scmp.eq.s32.totalorder %s19, 8
      %p129 = por %p127, %p128
      %p130 = scmp.ne.s32.totalorder %s119, %s120
      %p131 = scmp.eq.s32.totalorder %s19, 0
      %p132 = por %p130, %p131
      %p133 = scmp.ne.s32.totalorder %s119, %s120
      %p134 = scmp.eq.s32.totalorder %s20, 8
      %p135 = por %p133, %p134
      %p137 = scmp.ne.s32.totalorder %s120, %s136
      %p138 = scmp.eq.s32.totalorder %s20, 0
      %p139 = por %p137, %p138
      %s140 = ssub.s32 %s21, %s33
      %p141 = scmp.eq.s32.totalorder %s140, 0
      %s143 = sadd.s32 %s142, 1
      %s144 = scalar_select %p141, %s142, %s143
      %p147 = pneg %p141
      %p148 = scmp.eq.s32.totalorder %s14, 8
      %p149 = por %p147, %p148
      %p150 = scmp.ne.s32.totalorder %s142, %s145
      %p151 = scmp.eq.s32.totalorder %s14, 0
      %p152 = por %p150, %p151
      %p153 = scmp.ne.s32.totalorder %s142, %s145
      %p154 = scmp.eq.s32.totalorder %s19, 8
      %p155 = por %p153, %p154
      %p156 = scmp.ne.s32.totalorder %s145, %s146
      %p157 = scmp.eq.s32.totalorder %s19, 0
      %p158 = por %p156, %p157
      %p159 = scmp.ne.s32.totalorder %s145, %s146
      %p160 = scmp.eq.s32.totalorder %s20, 8
      %p161 = por %p159, %p160
      %p163 = scmp.ne.s32.totalorder %s146, %s162
      %p164 = scmp.eq.s32.totalorder %s20, 0
      %p165 = por %p163, %p164
      %p166 = scmp.le.s32.totalorder 1, %s14
      %p167 = scmp.lt.s32.totalorder %s14, 10
      %p168 = pnand %p166, %p167
      %p169 = pneg %p168
      // Predicated region
      $region9: #{tpu_custom_call.1} parent=5 // pred_check
        _
      $region10: #{tpu_custom_call.1} parent=5 // pred_check_branch
        %171 = sbr.rel (%p168) target = $region12
      $region11: #{tpu_custom_call.1} parent=5 // pred_region
        %s172 = ssub.s32 %s14, 1
      $region12: #{tpu_custom_call.1} parent=5 // pred_fallthru
        _
      %p173 = scmp.lt.s32.totalorder %s14, 9
      // Predicated region
      $region13: #{tpu_custom_call.1} parent=5 // pred_check
        %p174 = pneg %p173
      $region14: #{tpu_custom_call.1} parent=5 // pred_check_branch
        %176 = sbr.rel (%p174) target = $region16
      $region15: #{tpu_custom_call.1} parent=5 // pred_region
        // Predicated region
        $region17: #{tpu_custom_call.1} parent=15 // pred_check
          %p177 = pneg %p46
        $region18: #{tpu_custom_call.1} parent=15 // pred_check_branch
          %179 = sbr.rel (%p177) target = $region20
        $region19: #{tpu_custom_call.1} parent=15 // pred_region
          %p180 = scmp.lt.s32.totalorder %s21, 2
          %s181 = scalar_select %p180, %s21, 2
          %s182 = smul.addr %s181, 4
          %s183 = scalar_lea.vmem %s0, %s182
        $region20: #{tpu_custom_call.1} parent=15 // pred_fallthru
          _
        // Predicated region
        $region21: #{tpu_custom_call.1} parent=15 // pred_check
          %p184 = pneg %p72
        $region22: #{tpu_custom_call.1} parent=15 // pred_check_branch
          %186 = sbr.rel (%p184) target = $region24
        $region23: #{tpu_custom_call.1} parent=15 // pred_region
          %s187 = smul.u32 16, %s22
          %p188 = scmp.lt.s32.totalorder %s187, 47
          %s189 = scalar_select %p188, %s187, 47
          %s190 = smul.addr %s189, 4
          %s191 = scalar_lea.vmem %s1, %s190
          %s192 = smul.u32 16, %s22
        $region24: #{tpu_custom_call.1} parent=15 // pred_fallthru
          _
        // Predicated region
        $region25: #{tpu_custom_call.1} parent=15 // pred_check
          %p193 = pneg %p98
        $region26: #{tpu_custom_call.1} parent=15 // pred_check_branch
          %195 = sbr.rel (%p193) target = $region28
        $region27: #{tpu_custom_call.1} parent=15 // pred_region
          %p196 = scmp.lt.s32.totalorder %s21, 2
          %s197 = scalar_select %p196, %s21, 2
          %s198 = smul.addr %s197, 8
          %s199 = scalar_lea.vmem %s2, %s198
        $region28: #{tpu_custom_call.1} parent=15 // pred_fallthru
          _
      $region16: #{tpu_custom_call.1} parent=5 // pred_fallthru
        _
      %p200 = scmp.le.s32.totalorder 1, %s14
      %p201 = scmp.lt.s32.totalorder %s14, 10
      %p202 = pnand %p200, %p201
      %p203 = pneg %p202
      // Predicated region
      $region29: #{tpu_custom_call.1} parent=5 // pred_check
        _
      $region30: #{tpu_custom_call.1} parent=5 // pred_check_branch
        %205 = sbr.rel (%p202) target = $region32
      $region31: #{tpu_custom_call.1} parent=5 // pred_region
        %s206 = ssub.s32 %s14, 1
        %p207 = scmp.lt.s32.totalorder %s23, 2
        %s208 = scalar_select %p207, %s23, 2
        %s209 = smul.addr %s208, 4
        %s210 = scalar_lea.vmem %s0, %s209
        %p211 = pneg %p52
        %p212 = pneg %p49
        %s213 = smul.u32 16, %s24
        %p214 = scmp.lt.s32.totalorder %s213, 47
        %s215 = scalar_select %p214, %s213, 47
        %s216 = smul.addr %s215, 4
        %s217 = scalar_lea.vmem %s1, %s216
        %p218 = pneg %p78
        %p219 = pneg %p75
        %p220 = scmp.lt.s32.totalorder %s23, 2
        %s221 = scalar_select %p220, %s23, 2
        %s222 = smul.addr %s221, 8
        %s223 = scalar_lea.vmem %s2, %s222
        %p224 = pneg %p104
        %p225 = pneg %p101
        %p226 = pneg %p132
        %p227 = pneg %p129
        %s228 = sand.u32 %s119, 1
        %s229 = scalar_lea.sflag [#allocation6], %s228
        %s230 = sand.u32 %s119, 1
        %s231 = smul.addr %s230, 4
        %s232 = scalar_lea.vmem [#allocation5], %s231
        %p233 = pneg %p158
        %p234 = pneg %p155
        %p235 = scmp.lt.s32.totalorder %s23, 2
        %s236 = scalar_select %p235, %s23, 2
        %s237 = smul.addr %s236, 8
        %s238 = scalar_lea.vmem %s4, %s237
        %p239 = scmp.lt.s32.totalorder %s23, 2
        %s240 = scalar_select %p239, %s23, 2
        %s241 = smul.addr %s240, 4
        %s242 = scalar_lea.vmem %s0, %s241
        %s243 = smul.u32 16, %s24
        %p244 = scmp.lt.s32.totalorder %s243, 47
        %s245 = scalar_select %p244, %s243, 47
        %s246 = smul.addr %s245, 4
        %s247 = scalar_lea.vmem %s1, %s246
        %s248 = smul.u32 16, %s24
        %p249 = scmp.lt.s32.totalorder %s23, 2
        %s250 = scalar_select %p249, %s23, 2
        %s251 = smul.addr %s250, 8
        %s252 = scalar_lea.vmem %s2, %s251
        %p253 = scmp.lt.s32.totalorder %s23, 2
        %s254 = scalar_select %p253, %s23, 2
        %s255 = smul.addr %s254, 8
        %s256 = scalar_lea.vmem %s4, %s255
        %p258 = scmp.eq.s32.totalorder %s24, 0
        // Predicated region
        $region33: #{tpu_custom_call.1} parent=31 // pred_check
          %p259 = pneg %p258
        $region34: #{tpu_custom_call.1} parent=31 // pred_check_branch
          %261 = sbr.rel (%p259) target = $region36
        $region35: #{tpu_custom_call.1} parent=31 // pred_region
          %vm262 = vcmask 7168
          %263 = vst.msk [vmem:[#allocation2] sm:$0xff] %vm262, -inf
          %264 = vst.msk [vmem:[#allocation3] sm:$0xff] %vm262, 0.0
          %265 = vst.msk [vmem:[#allocation4] sm:$0xff] %vm262, 0.0
        $region36: #{tpu_custom_call.1} parent=31 // pred_fallthru
          _
        %v266 = vld [vmem:[%s242] sm:$0xf]
        %v267 = vld [vmem:[%s247] sm:$0xf]
        %v268 = vld [vmem:[%s247 + $0x4] sm:$0xf]
        %v269 = vld [vmem:[%s247 + $0x8] sm:$0xf]
        %v270 = vld [vmem:[%s247 + $0xc] sm:$0xf]
        %v271 = vld [vmem:[%s247 + $0x10] sm:$0xf]
        %v272 = vld [vmem:[%s247 + $0x14] sm:$0xf]
        %v273 = vld [vmem:[%s247 + $0x18] sm:$0xf]
        %v274 = vld [vmem:[%s247 + $0x1c] sm:$0xf]
        %v275 = vld [vmem:[%s247 + $0x20] sm:$0xf]
        %v276 = vld [vmem:[%s247 + $0x24] sm:$0xf]
        %v277 = vld [vmem:[%s247 + $0x28] sm:$0xf]
        %v278 = vld [vmem:[%s247 + $0x2c] sm:$0xf]
        %v279 = vld [vmem:[%s247 + $0x30] sm:$0xf]
        %v280 = vld [vmem:[%s247 + $0x34] sm:$0xf]
        %v281 = vld [vmem:[%s247 + $0x38] sm:$0xf]
        %v282 = vld [vmem:[%s247 + $0x3c] sm:$0xf]
        %v299 = vunpack.c.l.b16 %v267
        %v300 = vunpack.c.l.b16 %v268
        %v301 = vunpack.c.l.b16 %v269
        %v302 = vunpack.c.l.b16 %v270
        %v303 = vunpack.c.l.b16 %v271
        %v304 = vunpack.c.l.b16 %v272
        %v305 = vunpack.c.l.b16 %v273
        %v306 = vunpack.c.l.b16 %v274
        %v307 = vunpack.c.l.b16 %v275
        %v308 = vunpack.c.l.b16 %v276
        %v309 = vunpack.c.l.b16 %v277
        %v310 = vunpack.c.l.b16 %v278
        %v311 = vunpack.c.l.b16 %v279
        %v312 = vunpack.c.l.b16 %v280
        %v313 = vunpack.c.l.b16 %v281
        %v314 = vunpack.c.l.b16 %v282
        %v315 = vpack.c.b16 %v300, %v299
        %v316 = vpack.c.b16 %v302, %v301
        %v317 = vpack.c.b16 %v304, %v303
        %v318 = vpack.c.b16 %v306, %v305
        %v319 = vpack.c.b16 %v308, %v307
        %v320 = vpack.c.b16 %v310, %v309
        %v321 = vpack.c.b16 %v312, %v311
        %v322 = vpack.c.b16 %v314, %v313
        %vm323 = vcmask 523264
        %v325 = vsel %vm323, %v266, 0
        %v328 = vsel %vm323, %v315, 0
        %v331 = vsel %vm323, %v316, 0
        %v334 = vsel %vm323, %v317, 0
        %v337 = vsel %vm323, %v318, 0
        %v340 = vsel %vm323, %v319, 0
        %v343 = vsel %vm323, %v320, 0
        %v346 = vsel %vm323, %v321, 0
        %v349 = vsel %vm323, %v322, 0
        %351 = vmatprep.subr.bf16.mxu0 0
        %352 = vmatpush1.bf16.xpose.msra.mxu0 %v349
        %353 = vmatprep.subr.bf16.mxu0 0
        %354 = vmatpush1.bf16.xpose.msra.mxu0 %v346
        %355 = vmatprep.subr.bf16.mxu0 0
        %356 = vmatpush1.bf16.xpose.msra.mxu0 %v343
        %357 = vmatprep.subr.bf16.mxu0 0
        %358 = vmatpush1.bf16.xpose.msra.mxu0 %v340
        %359 = vmatprep.subr.bf16.mxu0 0
        %360 = vmatpush1.bf16.xpose.msra.mxu0 %v337
        %361 = vmatprep.subr.bf16.mxu0 0
        %362 = vmatpush1.bf16.xpose.msra.mxu0 %v334
        %363 = vmatprep.subr.bf16.mxu0 0
        %364 = vmatpush1.bf16.xpose.msra.mxu0 %v331
        %365 = vmatprep.subr.bf16.mxu0 0
        %366 = vmatpush1.bf16.xpose.msra.mxu0 %v328
        %367 = vmatprep.subr.bf16.mxu0 0
        %368 = vmatpush2.bf16.xpose.msra.mxu0 0
        %369 = vmatprep.subr.bf16.mxu0 0
        %370 = vmatpush2.bf16.xpose.msra.mxu0 0
        %371 = vmatprep.subr.bf16.mxu0 0
        %372 = vmatpush2.bf16.xpose.msra.mxu0 0
        %373 = vmatprep.subr.bf16.mxu0 0
        %374 = vmatpush2.bf16.xpose.msra.mxu0 0
        %375 = vmatprep.subr.bf16.mxu0 0
        %376 = vmatpush2.bf16.xpose.msra.mxu0 0
        %377 = vmatprep.subr.bf16.mxu0 0
        %378 = vmatpush2.bf16.xpose.msra.mxu0 0
        %379 = vmatprep.subr.bf16.mxu0 0
        %380 = vmatpush2.bf16.xpose.msra.mxu0 0
        %381 = vmatprep.subr.bf16.mxu0 0
        %382 = vmatpush2.bf16.xpose.msra.mxu0 0
        %383 = vmatprep.mubr.bf16.mxu0 0
        %384 = vmatmul.mubr.bf16.gmra.mxu0 %v325
        %v385 = vpop.f32.mrf.mxu0
        %v386 = vadd.f32 0.0, %v385
        %v387 = vpop.f32.mrf.mxu0
        %v388 = vpop.f32.mrf.mxu0
        %v389 = vpop.f32.mrf.mxu0
        %390 = vdwg.mxu0
        %v391 = vpack.c.bf16 %v386, %v386
        %392 = vst [vmem:[%s232] sm:$0xf] %v391
        %v393 = vlaneseq
        %v394 = vand.u32 %v393, 127
        %v395 = vld [vmem:[%s252] sm:$0xff]
        %s396 = smul.u32 %s24, 128
        %v397 = vstv %s396
        %v398 = vsub.s32 %v395, %v397
        %v399 = vld [vmem:[#allocation4] sm:$0xff]
        %400 = vset.pattern.permute.xlu0 0
        %401 = vperm.xlu0 %400, %v398
        %v402 = vpop.permute.xlu0 %401
        %vm403 = vcmp.eq.s32.totalorder %v394, %v402
        %v404 = vsel %vm403, %v386, 0.0
        %405 = vadd.xlane.f32.xlu0 %v404
        %v406 = vpop.xlane.xlu0 %405
        %v407 = vadd.f32 %v399, %v406
        %vm408 = vcmask 7168
        %409 = vst.msk [vmem:[#allocation4] sm:$0xff] %vm408, %v407
        %v410 = vld [vmem:[#allocation2] sm:$0xff]
        %p411 = scmp.ne.s32.totalorder %s24, 2
        // Predicated region
        $region37: #{tpu_custom_call.1} parent=31 // pred_check
          %p412 = pneg %p411
        $region38: #{tpu_custom_call.1} parent=31 // pred_check_branch
          %414 = sbr.rel (%p412) target = $region40
        $region39: #{tpu_custom_call.1} parent=31 // pred_region
          %415 = vmax.xlane.f32.xlu0 %v386
          %v416 = vpop.xlane.xlu0 %415
          %v417 = vmax.f32 %v410, %v416
          %v418 = vsub.f32 %v410, %v417
          %v419 = vmul.f32 %v418, 1.442695
          %v420 = vpow.pop %v419
          %v421 = vld [vmem:[#allocation3] sm:$0xff]
          %v422 = vmul.f32 %v420, %v421
          %424 = vset.pattern.permute.xlu0 0
          %425 = vperm.xlu0 %424, %v417
          %v426 = vpop.permute.xlu0 %425
          %v428 = vsub.f32 %v386, %v426
          %v429 = vmul.f32 %v428, 1.442695
          %v430 = vpow.pop %v429
          %431 = vadd.xlane.f32.xlu0 %v430
          %v432 = vpop.xlane.xlu0 %431
          %v433 = vadd.f32 %v422, %v432
          %434 = vst.msk [vmem:[#allocation3] sm:$0xff] %vm408, %v433
          %435 = vst.msk [vmem:[#allocation2] sm:$0xff] %vm408, %v417
        $region40: #{tpu_custom_call.1} parent=31 // pred_fallthru
          _
        %p436 = scmp.eq.s32.totalorder %s24, 2
        // Predicated region
        $region41: #{tpu_custom_call.1} parent=31 // pred_check
          %p437 = pneg %p436
        $region42: #{tpu_custom_call.1} parent=31 // pred_check_branch
          %439 = sbr.rel (%p437) target = $region44
        $region43: #{tpu_custom_call.1} parent=31 // pred_region
          %vm440 = vcmp.lt.s32.totalorder %v394, 44
          %v441 = vsel %vm440, %v386, -inf
          %442 = vmax.xlane.f32.xlu0 %v441
          %v443 = vpop.xlane.xlu0 %442
          %v444 = vmax.f32 %v410, %v443
          %v445 = vsub.f32 %v410, %v444
          %v446 = vmul.f32 %v445, 1.442695
          %v447 = vpow.pop %v446
          %v448 = vld [vmem:[#allocation3] sm:$0xff]
          %v449 = vmul.f32 %v447, %v448
          %451 = vset.pattern.permute.xlu0 0
          %452 = vperm.xlu0 %451, %v444
          %v453 = vpop.permute.xlu0 %452
          %v455 = vsub.f32 %v386, %v453
          %v456 = vmul.f32 %v455, 1.442695
          %v457 = vpow.pop %v456
          %v458 = vsel %vm440, %v457, 0.0
          %459 = vadd.xlane.f32.xlu0 %v458
          %v460 = vpop.xlane.xlu0 %459
          %v461 = vadd.f32 %v449, %v460
          %462 = vst.msk [vmem:[#allocation3] sm:$0xff] %vm408, %v461
          %463 = vst.msk [vmem:[#allocation2] sm:$0xff] %vm408, %v444
          %v464 = vld [vmem:[#allocation2] sm:$0xff]
          %v465 = vld [vmem:[#allocation3] sm:$0xff]
          %v466 = vlog2.pop %v465
          %v467 = vmul.f32 %v466, 0.6931472
          %v468 = vadd.f32 %v464, %v467
          %v469 = vld [vmem:[#allocation4] sm:$0xff]
          %v470 = vsub.f32 %v468, %v469
          %471 = vst.msk [vmem:[%s256] sm:$0xff] %vm408, %v470
        $region44: #{tpu_custom_call.1} parent=31 // pred_fallthru
          _
        %s472 = sand.u32 %s119, 1
        %s473 = scalar_lea.sflag [#allocation6], %s472
        %s474 = sand.u32 %s119, 1
        %s475 = smul.addr %s474, 4
        %s476 = scalar_lea.vmem [#allocation5], %s475
        %p477 = scmp.lt.s32.totalorder %s23, 2
        %s478 = scalar_select %p477, %s23, 2
        %s479 = smul.addr %s478, 8
        %s480 = scalar_lea.vmem %s4, %s479
        // Predicated region
        $region45: #{tpu_custom_call.1} parent=31 // pred_check
          %p481 = pneg %p129
        $region46: #{tpu_custom_call.1} parent=31 // pred_check_branch
          %483 = sbr.rel (%p481) target = $region48
        $region47: #{tpu_custom_call.1} parent=31 // pred_region
          %s485 = ssub.s32 64, 64
          %486 = vsyncadd %s473, %s485
          %s487 = smul.addr %s23, 3
          %s488 = sadd.s32 %s24, %s487
          %s489 = smul.addr %s488, 64
          %s490 = scalar_lea.hbm %s3, %s489
          %s492 = sshll.u32 %s476, 4
          %s493 = int_to_ptr.vmem [resolvable:$true] %s492
          %495 = dma.vmem_to_hbm [thread:$0]  %s493, 64, %s490, %s473
        $region48: #{tpu_custom_call.1} parent=31 // pred_fallthru
          _
        // Predicated region
        $region49: #{tpu_custom_call.1} parent=31 // pred_check
          %p496 = pneg %p155
        $region50: #{tpu_custom_call.1} parent=31 // pred_check_branch
          %498 = sbr.rel (%p496) target = $region52
        $region51: #{tpu_custom_call.1} parent=31 // pred_region
          _
        $region52: #{tpu_custom_call.1} parent=31 // pred_fallthru
          _
      $region32: #{tpu_custom_call.1} parent=5 // pred_fallthru
        _
      %p499 = scmp.le.s32.totalorder 2, %s14
      // Predicated region
      $region53: #{tpu_custom_call.1} parent=5 // pred_check
        %p500 = pneg %p499
      $region54: #{tpu_custom_call.1} parent=5 // pred_check_branch
        %502 = sbr.rel (%p500) target = $region56
      $region55: #{tpu_custom_call.1} parent=5 // pred_region
        %s503 = ssub.s32 %s14, 2
        // Predicated region
        $region57: #{tpu_custom_call.1} parent=55 // pred_check
          %p504 = pneg %p135
        $region58: #{tpu_custom_call.1} parent=55 // pred_check_branch
          %506 = sbr.rel (%p504) target = $region60
        $region59: #{tpu_custom_call.1} parent=55 // pred_region
          %s507 = sand.u32 %s120, 1
          %s508 = scalar_lea.sflag [#allocation6], %s507
          %s509 = sand.u32 %s120, 1
          %s510 = smul.addr %s509, 4
          %s511 = scalar_lea.vmem [#allocation5], %s510
          %512 = dma.done %s508, 64
        $region60: #{tpu_custom_call.1} parent=55 // pred_fallthru
          _
        // Predicated region
        $region61: #{tpu_custom_call.1} parent=55 // pred_check
          %p513 = pneg %p161
        $region62: #{tpu_custom_call.1} parent=55 // pred_check_branch
          %515 = sbr.rel (%p513) target = $region64
        $region63: #{tpu_custom_call.1} parent=55 // pred_region
          %p516 = scmp.lt.s32.totalorder %s25, 2
          %s517 = scalar_select %p516, %s25, 2
          %s518 = smul.addr %s517, 8
          %s519 = scalar_lea.vmem %s4, %s518
        $region64: #{tpu_custom_call.1} parent=55 // pred_fallthru
          _
      $region56: #{tpu_custom_call.1} parent=5 // pred_fallthru
        _
    $region6: #{tpu_custom_call.1} parent=1 // loop_footer
      %s18 = sadd.s32 1, %s14
    $region7: #{tpu_custom_call.1} parent=1 // loop_footer_branch
      %13 = sbr.rel target = $region3
    $region8: #{tpu_custom_call.1} parent=1 // loop_exit
      _
    %520 = vsyncpa [#allocation6], 1
    %s521 = scalar_lea.sflag [#allocation6], 1
    %522 = vsyncpa %s521, 1

</llo_original>
